<compile_context>
chip_gen: v5e
topology: v5e:2x2
jax: 0.10.0
libtpu: 0.0.40
codegen_flags: <defaults>
</compile_context>

<pallas_src>
import functools

import jax
import jax.numpy as jnp
from jax.experimental import pallas as pl
from jax.experimental.pallas import tpu as pltpu


def _round_up(x, m):
    return ((x + m - 1) // m) * m


def _pick_tile_e(num_edges, tile_cap):
    """256-aligned edge tile; keeps >= 2 grid steps for moderate E (v7x 2 TCs)."""
    tile_cap = max(256, _round_up(int(tile_cap), 256))
    if num_edges <= 512:
        return min(tile_cap, _round_up(max(num_edges, 1), 256))
    half = _round_up((num_edges + 1) // 2, 256)
    return min(tile_cap, half)


def _edge_encoder_kernel(packed_ref, offset_ref, emb_ref, out_ref, *,
                         coeff, dict_pad):
    # packed_ref: (TE, 2)        f32  col 0 = edge_length, col 1 = bitcast(edge_type)
    # offset_ref: (1, G)         f32  gaussian offsets   (resident across grid)
    # emb_ref:    (dict_pad, G)  f32  embedding table    (resident across grid)
    # out_ref:    (TE, 2*G)      f32  output tile
    g = offset_ref.shape[1]
    te = packed_ref.shape[0]

    packed = packed_ref[...]                                  # (TE, 2)
    d = packed[:, 0:1]                                        # (TE, 1) lengths
    idx = pltpu.bitcast(packed[:, 1:2], jnp.int32)            # (TE, 1) types

    # Gaussian smearing (VPU + EUP).
    diff = d - offset_ref[...]                                # (TE, G) broadcast
    rbf = jnp.exp(coeff * diff * diff)                        # (TE, G)

    # Embedding gather as a one-hot matmul on the MXU (exact f32 gather;
    # out-of-range / negative types yield a zero row, unlike nn.Embedding).
    lane = jax.lax.broadcasted_iota(jnp.int32, (te, dict_pad), 1)
    onehot = (lane == idx).astype(jnp.float32)                # (TE, dict_pad)
    emb = jnp.dot(onehot, emb_ref[...],
                  preferred_element_type=jnp.float32)         # (TE, G)

    # One full-width (128-lane) store instead of two masked 64-lane stores.
    out_ref[...] = jnp.concatenate([rbf, emb], axis=1)        # (TE, 2G)


def make_gaussian_smearing_edge_encoder(offset, emb_table, coeff, *,
                                        tile_cap=4096):
    """Builds a jitted encoder.  Constant prep (table pad, offset reshape,
    coeff cast) happens once here, not per call."""
    G = int(offset.shape[0])
    dict_size = int(emb_table.shape[0])
    dict_pad = _round_up(dict_size, 128)

    # Pad embedding rows to a 128-lane multiple for the one-hot matmul
    # (padded rows are never selected by valid edge types).
    emb_padded = jnp.zeros((dict_pad, G), jnp.float32).at[:dict_size].set(
        emb_table.astype(jnp.float32))
    offset_2d = offset.reshape(1, G).astype(jnp.float32)
    coeff = float(coeff)
    vmem = pltpu.MemorySpace.VMEM

    @jax.jit
    def encode(edge_length, edge_type):
        E = edge_length.shape[0]
        tile_e = _pick_tile_e(E, tile_cap)
        grid = (pl.cdiv(E, tile_e),)

        # Pack the two scalar-per-edge inputs into one lane-packed (E, 2) slab.
        packed = jnp.concatenate(
            [edge_length.reshape(E, 1).astype(jnp.float32),
             jax.lax.bitcast_convert_type(
                 edge_type.reshape(E, 1).astype(jnp.int32), jnp.float32)],
            axis=1)                                           # (E, 2) f32

        kernel = functools.partial(_edge_encoder_kernel, coeff=coeff,
                                   dict_pad=dict_pad)

        return pl.pallas_call(
            kernel,
            out_shape=jax.ShapeDtypeStruct((E, 2 * G), jnp.float32),
            grid=grid,
            in_specs=[
                pl.BlockSpec((tile_e, 2), lambda i: (i, 0), memory_space=vmem),
                # Constant index_map -> fetched once, resident across the grid.
                pl.BlockSpec((1, G), lambda i: (0, 0), memory_space=vmem),
                pl.BlockSpec((dict_pad, G), lambda i: (0, 0), memory_space=vmem),
            ],
            out_specs=pl.BlockSpec((tile_e, 2 * G), lambda i: (i, 0),
                                   memory_space=vmem),
            compiler_params=pltpu.CompilerParams(
                dimension_semantics=("parallel",)),
        )(packed, offset_2d, emb_padded)

    return encode


def reference(edge_length, edge_type, offset, emb_table, coeff):
    d = edge_length.reshape(-1, 1) - offset.reshape(1, -1)
    rbf = jnp.exp(coeff * d * d)
    emb = emb_table[edge_type]
    return jnp.concatenate([rbf, emb], axis=1)


if __name__ == "__main__":
    num_gaussians = 64
    cutoff = 10.0
    dict_size = 100
    E = 300  # not a tile multiple on purpose -> exercises the partial last block

    # GaussianSmearing(start=0.0, stop=2*cutoff, num_gaussians)
    offset = jnp.linspace(0.0, cutoff * 2.0, num_gaussians)
    coeff = -0.5 / float(offset[1] - offset[0]) ** 2

    # Deterministic parameter init (nn.Embedding default: N(0, 1)).
    key = jax.random.PRNGKey(0)
    k_emb, k_len, k_type = jax.random.split(key, 3)
    emb_table = jax.random.normal(k_emb, (dict_size, num_gaussians),
                                  dtype=jnp.float32)

    # Example inputs.
    edge_length = jax.random.uniform(k_len, (E, 1), dtype=jnp.float32,
                                     minval=0.0, maxval=cutoff)
    edge_type = jax.random.randint(k_type, (E,), 0, dict_size, dtype=jnp.int32)

    encode = make_gaussian_smearing_edge_encoder(offset, emb_table, coeff)
    out = jax.block_until_ready(encode(edge_length, edge_type))

    ref = reference(edge_length, edge_type, offset, emb_table, coeff)
    assert out.shape == (E, 2 * num_gaussians)
    assert jnp.allclose(out, ref, atol=1e-5, rtol=1e-5)

    print("KERNEL_OK")
</pallas_src>

<mosaic_0001>
module attributes {stable_mosaic.version = 11 : i64} {
  func.func @_edge_encoder_kernel(%arg0: i32, %arg1: memref<512x2xf32, #tpu.memory_space<vmem>>, %arg2: memref<1x64xf32, #tpu.memory_space<vmem>>, %arg3: memref<128x64xf32, #tpu.memory_space<vmem>>, %arg4: memref<512x128xf32, #tpu.memory_space<vmem>>) attributes {dimension_semantics = [#tpu.dimension_semantics<parallel>], iteration_bounds = array<i64: 1>, scalar_prefetch = 0 : i64, scratch_operands = 0 : i64, tpu.core_type = #tpu.core_type<tc>, window_params = [{transform_indices = @transform_0, window_bounds = array<i64: 512, 2>}, {pipeline_mode = #tpu.pipeline_mode<synchronous>, transform_indices = @transform_1, window_bounds = array<i64: 1, 64>}, {pipeline_mode = #tpu.pipeline_mode<synchronous>, transform_indices = @transform_2, window_bounds = array<i64: 128, 64>}, {transform_indices = @transform_3, window_bounds = array<i64: 512, 128>}]} {
    %c0 = arith.constant 0 : index
    %c0_0 = arith.constant 0 : index
    %0 = vector.load %arg1[%c0, %c0_0] : memref<512x2xf32, #tpu.memory_space<vmem>>, vector<512x2xf32>
    %1 = vector.extract_strided_slice %0 {offsets = [0, 0], sizes = [512, 1], strides = [1, 1]} : vector<512x2xf32> to vector<512x1xf32>
    %2 = vector.extract_strided_slice %0 {offsets = [0, 1], sizes = [512, 1], strides = [1, 1]} : vector<512x2xf32> to vector<512x1xf32>
    %3 = tpu.bitcast %2 : vector<512x1xf32> -> vector<512x1xi32>
    %c0_1 = arith.constant 0 : index
    %c0_2 = arith.constant 0 : index
    %4 = vector.load %arg2[%c0_1, %c0_2] : memref<1x64xf32, #tpu.memory_space<vmem>>, vector<1x64xf32>
    %5 = vector.broadcast %1 : vector<512x1xf32> to vector<512x64xf32>
    %6 = vector.broadcast %4 : vector<1x64xf32> to vector<512x64xf32>
    %7 = arith.subf %5, %6 : vector<512x64xf32>
    %cst = arith.constant -4.961250e+00 : f32
    %8 = vector.broadcast %cst : f32 to vector<512x64xf32>
    %9 = arith.mulf %8, %7 : vector<512x64xf32>
    %10 = arith.mulf %9, %7 : vector<512x64xf32>
    %11 = math.exp %10 : vector<512x64xf32>
    %12 = tpu.iota {dimensions = array<i32: 1>} : vector<512x128xi32>
    %13 = vector.broadcast %3 : vector<512x1xi32> to vector<512x128xi32>
    %14 = arith.cmpi eq, %12, %13 : vector<512x128xi32>
    %15 = arith.extui %14 : vector<512x128xi1> to vector<512x128xi32>
    %16 = arith.sitofp %15 : vector<512x128xi32> to vector<512x128xf32>
    %c0_3 = arith.constant 0 : index
    %c0_4 = arith.constant 0 : index
    %17 = vector.load %arg3[%c0_3, %c0_4] : memref<128x64xf32, #tpu.memory_space<vmem>>, vector<128x64xf32>
    %cst_5 = arith.constant dense<0.000000e+00> : vector<512x64xf32>
    %18 = tpu.matmul %16, %17, %cst_5 {dimension_numbers = #tpu.dot_dimension_numbers<[1], [0], [0], [1], [0, 0, 1, 1], [], []>} : vector<512x128xf32>, vector<128x64xf32>, vector<512x64xf32> -> vector<512x64xf32>
    %19 = tpu.concatenate %11, %18 in 1 : vector<512x64xf32>, vector<512x64xf32> -> vector<512x128xf32>
    %c0_6 = arith.constant 0 : index
    %c0_7 = arith.constant 0 : index
    %20 = vector.load %arg4[%c0_6, %c0_7] : memref<512x128xf32, #tpu.memory_space<vmem>>, vector<512x128xf32>
    tpu.vector_store %arg4[%c0_6, %c0_7], %19 {strides = array<i32>} : memref<512x128xf32, #tpu.memory_space<vmem>>, vector<512x128xf32>,
    return
  }
  func.func @transform_0(%arg0: i32) -> (i32, i32) {
    %c0_i32 = arith.constant 0 : i32
    %c0_i32_0 = arith.constant 0 : i32
    return %arg0, %c0_i32 : i32, i32
  }
  func.func @transform_1(%arg0: i32) -> (i32, i32) {
    %c0_i32 = arith.constant 0 : i32
    %c0_i32_0 = arith.constant 0 : i32
    %c0_i32_1 = arith.constant 0 : i32
    return %c0_i32, %c0_i32_0 : i32, i32
  }
  func.func @transform_2(%arg0: i32) -> (i32, i32) {
    %c0_i32 = arith.constant 0 : i32
    %c0_i32_0 = arith.constant 0 : i32
    %c0_i32_1 = arith.constant 0 : i32
    return %c0_i32, %c0_i32_0 : i32, i32
  }
  func.func @transform_3(%arg0: i32) -> (i32, i32) {
    %c0_i32 = arith.constant 0 : i32
    %c0_i32_0 = arith.constant 0 : i32
    return %arg0, %c0_i32 : i32, i32
  }
}

</mosaic_0001>

<llo_original>
// kernel: encode.1
$region0: #{encode.1}
  #allocation0 [shape = 'u32[]', space=smem, size = 0x4, offset = 0x4, fixed_abs, tag = 'smem constant byte address 0x4 - core index']
  #allocation1 [shape = 'u32[72,128]{1,0:T(1,128)}', space=vmem, size = 0x9000, scoped, tag = 'internal scratch']
  %s0 = inlined_call_operand.vmem [shape: f32[300,2], index: 0, kind: input, shape index: {}]
  %s1 = inlined_call_operand.vmem [shape: f32[1,64], index: 1, kind: input, shape index: {}]
  %s2 = inlined_call_operand.vmem [shape: f32[128,64], index: 2, kind: input, shape index: {}]
  %s3 = inlined_call_operand.hbm [shape: f32[300,128], index: 3, kind: output, shape index: {}]
  %s4 = sld [smem:[#allocation0]]
  $region22: #{encode.1} parent=0
    _
  %s6 = ssub.s32 1, %s4
  %s7 = scalar_select 0, %s6, %s4
  $region1: #{encode.1} parent=0
    #allocation2 [shape = 'u8[262144]{0}', space=vmem, size = 0x40000, scoped, tag = 'output window, operand 0, single buffered']
    #allocation3 [shape = 's32[1]{0}', space=sflag, size = 0x4, scoped, tag = 'scoped memory for encode.1']
    %8 = vsyncpa [#allocation3], 0
    // Predicated region
    $region2: #{encode.1} parent=1 // pred_check
      _
    $region3: #{encode.1} parent=1 // pred_check_branch
      %10 = sbr.rel (0) target = $region5
    $region4: #{encode.1} parent=1 // pred_region
      _
    $region5: #{encode.1} parent=1 // pred_fallthru
      _
    // Predicated region
    $region6: #{encode.1} parent=1 // pred_check
      _
    $region7: #{encode.1} parent=1 // pred_check_branch
      %12 = sbr.rel (0) target = $region9
    $region8: #{encode.1} parent=1 // pred_region
      _
    $region9: #{encode.1} parent=1 // pred_fallthru
      _
    // Predicated region
    $region10: #{encode.1} parent=1 // pred_check
      _
    $region11: #{encode.1} parent=1 // pred_check_branch
      %14 = sbr.rel (0) target = $region13
    $region12: #{encode.1} parent=1 // pred_region
      _
    $region13: #{encode.1} parent=1 // pred_fallthru
      _
    %v15 = vld [vmem:[%s0] sm:$0xff]
    %v16 = vld [vmem:[%s0 + $0x8] sm:$0xff]
    %v17 = vld [vmem:[%s0 + $0x10] sm:$0xff]
    %v18 = vld [vmem:[%s0 + $0x18] sm:$0xff]
    %v19 = vld [vmem:[%s0 + $0x20] sm:$0xff]
    %v20 = vld [vmem:[%s0 + $0x28] sm:$0xff]
    %v21 = vld [vmem:[%s0 + $0x30] sm:$0xff]
    %v22 = vld [vmem:[%s0 + $0x38] sm:$0xff]
    %v23 = vld [vmem:[%s0 + $0x40] sm:$0xff]
    %v24 = vld [vmem:[%s0 + $0x48] sm:$0xff]
    %v25 = vld [vmem:[%s0 + $0x50] sm:$0xff]
    %v26 = vld [vmem:[%s0 + $0x58] sm:$0xff]
    %v27 = vld [vmem:[%s0 + $0x60] sm:$0xff]
    %v28 = vld [vmem:[%s0 + $0x68] sm:$0xff]
    %v29 = vld [vmem:[%s0 + $0x70] sm:$0xff]
    %v30 = vld [vmem:[%s0 + $0x78] sm:$0xff]
    %v31 = vld [vmem:[%s0 + $0x80] sm:$0xff]
    %v32 = vld [vmem:[%s0 + $0x88] sm:$0xff]
    %v33 = vld [vmem:[%s0 + $0x90] sm:$0xff]
    %v34 = vld [vmem:[%s0 + $0x98] sm:$0xff]
    %v35 = vld [vmem:[%s0 + $0xa0] sm:$0xff]
    %v36 = vld [vmem:[%s0 + $0xa8] sm:$0xff]
    %v37 = vld [vmem:[%s0 + $0xb0] sm:$0xff]
    %v38 = vld [vmem:[%s0 + $0xb8] sm:$0xff]
    %v39 = vld [vmem:[%s0 + $0xc0] sm:$0xff]
    %v40 = vld [vmem:[%s0 + $0xc8] sm:$0xff]
    %v41 = vld [vmem:[%s0 + $0xd0] sm:$0xff]
    %v42 = vld [vmem:[%s0 + $0xd8] sm:$0xff]
    %v43 = vld [vmem:[%s0 + $0xe0] sm:$0xff]
    %v44 = vld [vmem:[%s0 + $0xe8] sm:$0xff]
    %v45 = vld [vmem:[%s0 + $0xf0] sm:$0xff]
    %v46 = vld [vmem:[%s0 + $0xf8] sm:$0xff]
    %v47 = vld [vmem:[%s0 + $0x100] sm:$0xff]
    %v48 = vld [vmem:[%s0 + $0x108] sm:$0xff]
    %v49 = vld [vmem:[%s0 + $0x110] sm:$0xff]
    %v50 = vld [vmem:[%s0 + $0x118] sm:$0xff]
    %v51 = vld [vmem:[%s0 + $0x120] sm:$0xff]
    %v52 = vld [vmem:[%s0 + $0x128] sm:$0xff]
    %v53 = vld [vmem:[%s0 + $0x130] sm:$0xff]
    %v54 = vld [vmem:[%s0 + $0x138] sm:$0xff]
    %v55 = vld [vmem:[%s0 + $0x140] sm:$0xff]
    %v56 = vld [vmem:[%s0 + $0x148] sm:$0xff]
    %v57 = vld [vmem:[%s0 + $0x150] sm:$0xff]
    %v58 = vld [vmem:[%s0 + $0x158] sm:$0xff]
    %v59 = vld [vmem:[%s0 + $0x160] sm:$0xff]
    %v60 = vld [vmem:[%s0 + $0x168] sm:$0xff]
    %v61 = vld [vmem:[%s0 + $0x170] sm:$0xff]
    %v62 = vld [vmem:[%s0 + $0x178] sm:$0xff]
    %v63 = vld [vmem:[%s0 + $0x180] sm:$0xff]
    %v64 = vld [vmem:[%s0 + $0x188] sm:$0xff]
    %v65 = vld [vmem:[%s0 + $0x190] sm:$0xff]
    %v66 = vld [vmem:[%s0 + $0x198] sm:$0xff]
    %v67 = vld [vmem:[%s0 + $0x1a0] sm:$0xff]
    %v68 = vld [vmem:[%s0 + $0x1a8] sm:$0xff]
    %v69 = vld [vmem:[%s0 + $0x1b0] sm:$0xff]
    %v70 = vld [vmem:[%s0 + $0x1b8] sm:$0xff]
    %v71 = vld [vmem:[%s0 + $0x1c0] sm:$0xff]
    %v72 = vld [vmem:[%s0 + $0x1c8] sm:$0xff]
    %v73 = vld [vmem:[%s0 + $0x1d0] sm:$0xff]
    %v74 = vld [vmem:[%s0 + $0x1d8] sm:$0xff]
    %v75 = vld [vmem:[%s0 + $0x1e0] sm:$0xff]
    %v76 = vld [vmem:[%s0 + $0x1e8] sm:$0xff]
    %v77 = vld [vmem:[%s0 + $0x1f0] sm:$0xff]
    %v78 = vld [vmem:[%s0 + $0x1f8] sm:$0xff]
    %v143 = vld [vmem:[%s1] sm:$0x1]
    %144 = vset.pattern.permute.xlu0 0
    %145 = vperm.xlu0 %144, %v15
    %v146 = vpop.permute.xlu0 %145
    %148 = vset.pattern.permute.xlu0 0
    %149 = vperm.xlu0 %148, %v16
    %v150 = vpop.permute.xlu0 %149
    %152 = vset.pattern.permute.xlu0 0
    %153 = vperm.xlu0 %152, %v17
    %v154 = vpop.permute.xlu0 %153
    %156 = vset.pattern.permute.xlu0 0
    %157 = vperm.xlu0 %156, %v18
    %v158 = vpop.permute.xlu0 %157
    %160 = vset.pattern.permute.xlu0 0
    %161 = vperm.xlu0 %160, %v19
    %v162 = vpop.permute.xlu0 %161
    %164 = vset.pattern.permute.xlu0 0
    %165 = vperm.xlu0 %164, %v20
    %v166 = vpop.permute.xlu0 %165
    %168 = vset.pattern.permute.xlu0 0
    %169 = vperm.xlu0 %168, %v21
    %v170 = vpop.permute.xlu0 %169
    %172 = vset.pattern.permute.xlu0 0
    %173 = vperm.xlu0 %172, %v22
    %v174 = vpop.permute.xlu0 %173
    %176 = vset.pattern.permute.xlu0 0
    %177 = vperm.xlu0 %176, %v23
    %v178 = vpop.permute.xlu0 %177
    %180 = vset.pattern.permute.xlu0 0
    %181 = vperm.xlu0 %180, %v24
    %v182 = vpop.permute.xlu0 %181
    %184 = vset.pattern.permute.xlu0 0
    %185 = vperm.xlu0 %184, %v25
    %v186 = vpop.permute.xlu0 %185
    %188 = vset.pattern.permute.xlu0 0
    %189 = vperm.xlu0 %188, %v26
    %v190 = vpop.permute.xlu0 %189
    %192 = vset.pattern.permute.xlu0 0
    %193 = vperm.xlu0 %192, %v27
    %v194 = vpop.permute.xlu0 %193
    %196 = vset.pattern.permute.xlu0 0
    %197 = vperm.xlu0 %196, %v28
    %v198 = vpop.permute.xlu0 %197
    %200 = vset.pattern.permute.xlu0 0
    %201 = vperm.xlu0 %200, %v29
    %v202 = vpop.permute.xlu0 %201
    %204 = vset.pattern.permute.xlu0 0
    %205 = vperm.xlu0 %204, %v30
    %v206 = vpop.permute.xlu0 %205
    %208 = vset.pattern.permute.xlu0 0
    %209 = vperm.xlu0 %208, %v31
    %v210 = vpop.permute.xlu0 %209
    %212 = vset.pattern.permute.xlu0 0
    %213 = vperm.xlu0 %212, %v32
    %v214 = vpop.permute.xlu0 %213
    %216 = vset.pattern.permute.xlu0 0
    %217 = vperm.xlu0 %216, %v33
    %v218 = vpop.permute.xlu0 %217
    %220 = vset.pattern.permute.xlu0 0
    %221 = vperm.xlu0 %220, %v34
    %v222 = vpop.permute.xlu0 %221
    %224 = vset.pattern.permute.xlu0 0
    %225 = vperm.xlu0 %224, %v35
    %v226 = vpop.permute.xlu0 %225
    %228 = vset.pattern.permute.xlu0 0
    %229 = vperm.xlu0 %228, %v36
    %v230 = vpop.permute.xlu0 %229
    %232 = vset.pattern.permute.xlu0 0
    %233 = vperm.xlu0 %232, %v37
    %v234 = vpop.permute.xlu0 %233
    %236 = vset.pattern.permute.xlu0 0
    %237 = vperm.xlu0 %236, %v38
    %v238 = vpop.permute.xlu0 %237
    %240 = vset.pattern.permute.xlu0 0
    %241 = vperm.xlu0 %240, %v39
    %v242 = vpop.permute.xlu0 %241
    %244 = vset.pattern.permute.xlu0 0
    %245 = vperm.xlu0 %244, %v40
    %v246 = vpop.permute.xlu0 %245
    %248 = vset.pattern.permute.xlu0 0
    %249 = vperm.xlu0 %248, %v41
    %v250 = vpop.permute.xlu0 %249
    %252 = vset.pattern.permute.xlu0 0
    %253 = vperm.xlu0 %252, %v42
    %v254 = vpop.permute.xlu0 %253
    %256 = vset.pattern.permute.xlu0 0
    %257 = vperm.xlu0 %256, %v43
    %v258 = vpop.permute.xlu0 %257
    %260 = vset.pattern.permute.xlu0 0
    %261 = vperm.xlu0 %260, %v44
    %v262 = vpop.permute.xlu0 %261
    %264 = vset.pattern.permute.xlu0 0
    %265 = vperm.xlu0 %264, %v45
    %v266 = vpop.permute.xlu0 %265
    %268 = vset.pattern.permute.xlu0 0
    %269 = vperm.xlu0 %268, %v46
    %v270 = vpop.permute.xlu0 %269
    %272 = vset.pattern.permute.xlu0 0
    %273 = vperm.xlu0 %272, %v47
    %v274 = vpop.permute.xlu0 %273
    %276 = vset.pattern.permute.xlu0 0
    %277 = vperm.xlu0 %276, %v48
    %v278 = vpop.permute.xlu0 %277
    %280 = vset.pattern.permute.xlu0 0
    %281 = vperm.xlu0 %280, %v49
    %v282 = vpop.permute.xlu0 %281
    %284 = vset.pattern.permute.xlu0 0
    %285 = vperm.xlu0 %284, %v50
    %v286 = vpop.permute.xlu0 %285
    %288 = vset.pattern.permute.xlu0 0
    %289 = vperm.xlu0 %288, %v51
    %v290 = vpop.permute.xlu0 %289
    %292 = vset.pattern.permute.xlu0 0
    %293 = vperm.xlu0 %292, %v52
    %v294 = vpop.permute.xlu0 %293
    %296 = vset.pattern.permute.xlu0 0
    %297 = vperm.xlu0 %296, %v53
    %v298 = vpop.permute.xlu0 %297
    %300 = vset.pattern.permute.xlu0 0
    %301 = vperm.xlu0 %300, %v54
    %v302 = vpop.permute.xlu0 %301
    %304 = vset.pattern.permute.xlu0 0
    %305 = vperm.xlu0 %304, %v55
    %v306 = vpop.permute.xlu0 %305
    %308 = vset.pattern.permute.xlu0 0
    %309 = vperm.xlu0 %308, %v56
    %v310 = vpop.permute.xlu0 %309
    %312 = vset.pattern.permute.xlu0 0
    %313 = vperm.xlu0 %312, %v57
    %v314 = vpop.permute.xlu0 %313
    %316 = vset.pattern.permute.xlu0 0
    %317 = vperm.xlu0 %316, %v58
    %v318 = vpop.permute.xlu0 %317
    %320 = vset.pattern.permute.xlu0 0
    %321 = vperm.xlu0 %320, %v59
    %v322 = vpop.permute.xlu0 %321
    %324 = vset.pattern.permute.xlu0 0
    %325 = vperm.xlu0 %324, %v60
    %v326 = vpop.permute.xlu0 %325
    %328 = vset.pattern.permute.xlu0 0
    %329 = vperm.xlu0 %328, %v61
    %v330 = vpop.permute.xlu0 %329
    %332 = vset.pattern.permute.xlu0 0
    %333 = vperm.xlu0 %332, %v62
    %v334 = vpop.permute.xlu0 %333
    %336 = vset.pattern.permute.xlu0 0
    %337 = vperm.xlu0 %336, %v63
    %v338 = vpop.permute.xlu0 %337
    %340 = vset.pattern.permute.xlu0 0
    %341 = vperm.xlu0 %340, %v64
    %v342 = vpop.permute.xlu0 %341
    %344 = vset.pattern.permute.xlu0 0
    %345 = vperm.xlu0 %344, %v65
    %v346 = vpop.permute.xlu0 %345
    %348 = vset.pattern.permute.xlu0 0
    %349 = vperm.xlu0 %348, %v66
    %v350 = vpop.permute.xlu0 %349
    %352 = vset.pattern.permute.xlu0 0
    %353 = vperm.xlu0 %352, %v67
    %v354 = vpop.permute.xlu0 %353
    %356 = vset.pattern.permute.xlu0 0
    %357 = vperm.xlu0 %356, %v68
    %v358 = vpop.permute.xlu0 %357
    %360 = vset.pattern.permute.xlu0 0
    %361 = vperm.xlu0 %360, %v69
    %v362 = vpop.permute.xlu0 %361
    %364 = vset.pattern.permute.xlu0 0
    %365 = vperm.xlu0 %364, %v70
    %v366 = vpop.permute.xlu0 %365
    %368 = vset.pattern.permute.xlu0 0
    %369 = vperm.xlu0 %368, %v71
    %v370 = vpop.permute.xlu0 %369
    %372 = vset.pattern.permute.xlu0 0
    %373 = vperm.xlu0 %372, %v72
    %v374 = vpop.permute.xlu0 %373
    %376 = vset.pattern.permute.xlu0 0
    %377 = vperm.xlu0 %376, %v73
    %v378 = vpop.permute.xlu0 %377
    %380 = vset.pattern.permute.xlu0 0
    %381 = vperm.xlu0 %380, %v74
    %v382 = vpop.permute.xlu0 %381
    %384 = vset.pattern.permute.xlu0 0
    %385 = vperm.xlu0 %384, %v75
    %v386 = vpop.permute.xlu0 %385
    %388 = vset.pattern.permute.xlu0 0
    %389 = vperm.xlu0 %388, %v76
    %v390 = vpop.permute.xlu0 %389
    %392 = vset.pattern.permute.xlu0 0
    %393 = vperm.xlu0 %392, %v77
    %v394 = vpop.permute.xlu0 %393
    %396 = vset.pattern.permute.xlu0 0
    %397 = vperm.xlu0 %396, %v78
    %v398 = vpop.permute.xlu0 %397
    %v401 = vperm.slane %v143, 0
    %v403 = vsub.f32 %v146, %v401
    %v404 = vsub.f32 %v150, %v401
    %v405 = vsub.f32 %v154, %v401
    %v406 = vsub.f32 %v158, %v401
    %v407 = vsub.f32 %v162, %v401
    %v408 = vsub.f32 %v166, %v401
    %v409 = vsub.f32 %v170, %v401
    %v410 = vsub.f32 %v174, %v401
    %v411 = vsub.f32 %v178, %v401
    %v412 = vsub.f32 %v182, %v401
    %v413 = vsub.f32 %v186, %v401
    %v414 = vsub.f32 %v190, %v401
    %v415 = vsub.f32 %v194, %v401
    %v416 = vsub.f32 %v198, %v401
    %v417 = vsub.f32 %v202, %v401
    %v418 = vsub.f32 %v206, %v401
    %v419 = vsub.f32 %v210, %v401
    %v420 = vsub.f32 %v214, %v401
    %v421 = vsub.f32 %v218, %v401
    %v422 = vsub.f32 %v222, %v401
    %v423 = vsub.f32 %v226, %v401
    %v424 = vsub.f32 %v230, %v401
    %v425 = vsub.f32 %v234, %v401
    %v426 = vsub.f32 %v238, %v401
    %v427 = vsub.f32 %v242, %v401
    %v428 = vsub.f32 %v246, %v401
    %v429 = vsub.f32 %v250, %v401
    %v430 = vsub.f32 %v254, %v401
    %v431 = vsub.f32 %v258, %v401
    %v432 = vsub.f32 %v262, %v401
    %v433 = vsub.f32 %v266, %v401
    %v434 = vsub.f32 %v270, %v401
    %v435 = vsub.f32 %v274, %v401
    %v436 = vsub.f32 %v278, %v401
    %v437 = vsub.f32 %v282, %v401
    %v438 = vsub.f32 %v286, %v401
    %v439 = vsub.f32 %v290, %v401
    %v440 = vsub.f32 %v294, %v401
    %v441 = vsub.f32 %v298, %v401
    %v442 = vsub.f32 %v302, %v401
    %v443 = vsub.f32 %v306, %v401
    %v444 = vsub.f32 %v310, %v401
    %v445 = vsub.f32 %v314, %v401
    %v446 = vsub.f32 %v318, %v401
    %v447 = vsub.f32 %v322, %v401
    %v448 = vsub.f32 %v326, %v401
    %v449 = vsub.f32 %v330, %v401
    %v450 = vsub.f32 %v334, %v401
    %v451 = vsub.f32 %v338, %v401
    %v452 = vsub.f32 %v342, %v401
    %v453 = vsub.f32 %v346, %v401
    %v454 = vsub.f32 %v350, %v401
    %v455 = vsub.f32 %v354, %v401
    %v456 = vsub.f32 %v358, %v401
    %v457 = vsub.f32 %v362, %v401
    %v458 = vsub.f32 %v366, %v401
    %v459 = vsub.f32 %v370, %v401
    %v460 = vsub.f32 %v374, %v401
    %v461 = vsub.f32 %v378, %v401
    %v462 = vsub.f32 %v382, %v401
    %v463 = vsub.f32 %v386, %v401
    %v464 = vsub.f32 %v390, %v401
    %v465 = vsub.f32 %v394, %v401
    %v466 = vsub.f32 %v398, %v401
    %v467 = vmul.f32 %v403, -4.96125
    %v468 = vmul.f32 %v404, -4.96125
    %v469 = vmul.f32 %v405, -4.96125
    %v470 = vmul.f32 %v406, -4.96125
    %v471 = vmul.f32 %v407, -4.96125
    %v472 = vmul.f32 %v408, -4.96125
    %v473 = vmul.f32 %v409, -4.96125
    %v474 = vmul.f32 %v410, -4.96125
    %v475 = vmul.f32 %v411, -4.96125
    %v476 = vmul.f32 %v412, -4.96125
    %v477 = vmul.f32 %v413, -4.96125
    %v478 = vmul.f32 %v414, -4.96125
    %v479 = vmul.f32 %v415, -4.96125
    %v480 = vmul.f32 %v416, -4.96125
    %v481 = vmul.f32 %v417, -4.96125
    %v482 = vmul.f32 %v418, -4.96125
    %v483 = vmul.f32 %v419, -4.96125
    %v484 = vmul.f32 %v420, -4.96125
    %v485 = vmul.f32 %v421, -4.96125
    %v486 = vmul.f32 %v422, -4.96125
    %v487 = vmul.f32 %v423, -4.96125
    %v488 = vmul.f32 %v424, -4.96125
    %v489 = vmul.f32 %v425, -4.96125
    %v490 = vmul.f32 %v426, -4.96125
    %v491 = vmul.f32 %v427, -4.96125
    %v492 = vmul.f32 %v428, -4.96125
    %v493 = vmul.f32 %v429, -4.96125
    %v494 = vmul.f32 %v430, -4.96125
    %v495 = vmul.f32 %v431, -4.96125
    %v496 = vmul.f32 %v432, -4.96125
    %v497 = vmul.f32 %v433, -4.96125
    %v498 = vmul.f32 %v434, -4.96125
    %v499 = vmul.f32 %v435, -4.96125
    %v500 = vmul.f32 %v436, -4.96125
    %v501 = vmul.f32 %v437, -4.96125
    %v502 = vmul.f32 %v438, -4.96125
    %v503 = vmul.f32 %v439, -4.96125
    %v504 = vmul.f32 %v440, -4.96125
    %v505 = vmul.f32 %v441, -4.96125
    %v506 = vmul.f32 %v442, -4.96125
    %v507 = vmul.f32 %v443, -4.96125
    %v508 = vmul.f32 %v444, -4.96125
    %v509 = vmul.f32 %v445, -4.96125
    %v510 = vmul.f32 %v446, -4.96125
    %v511 = vmul.f32 %v447, -4.96125
    %v512 = vmul.f32 %v448, -4.96125
    %v513 = vmul.f32 %v449, -4.96125
    %v514 = vmul.f32 %v450, -4.96125
    %v515 = vmul.f32 %v451, -4.96125
    %v516 = vmul.f32 %v452, -4.96125
    %v517 = vmul.f32 %v453, -4.96125
    %v518 = vmul.f32 %v454, -4.96125
    %v519 = vmul.f32 %v455, -4.96125
    %v520 = vmul.f32 %v456, -4.96125
    %v521 = vmul.f32 %v457, -4.96125
    %v522 = vmul.f32 %v458, -4.96125
    %v523 = vmul.f32 %v459, -4.96125
    %v524 = vmul.f32 %v460, -4.96125
    %v525 = vmul.f32 %v461, -4.96125
    %v526 = vmul.f32 %v462, -4.96125
    %v527 = vmul.f32 %v463, -4.96125
    %v528 = vmul.f32 %v464, -4.96125
    %v529 = vmul.f32 %v465, -4.96125
    %v530 = vmul.f32 %v466, -4.96125
    %v531 = vmul.f32 %v467, %v403
    %v532 = vmul.f32 %v468, %v404
    %v533 = vmul.f32 %v469, %v405
    %v534 = vmul.f32 %v470, %v406
    %v535 = vmul.f32 %v471, %v407
    %v536 = vmul.f32 %v472, %v408
    %v537 = vmul.f32 %v473, %v409
    %v538 = vmul.f32 %v474, %v410
    %v539 = vmul.f32 %v475, %v411
    %v540 = vmul.f32 %v476, %v412
    %v541 = vmul.f32 %v477, %v413
    %v542 = vmul.f32 %v478, %v414
    %v543 = vmul.f32 %v479, %v415
    %v544 = vmul.f32 %v480, %v416
    %v545 = vmul.f32 %v481, %v417
    %v546 = vmul.f32 %v482, %v418
    %v547 = vmul.f32 %v483, %v419
    %v548 = vmul.f32 %v484, %v420
    %v549 = vmul.f32 %v485, %v421
    %v550 = vmul.f32 %v486, %v422
    %v551 = vmul.f32 %v487, %v423
    %v552 = vmul.f32 %v488, %v424
    %v553 = vmul.f32 %v489, %v425
    %v554 = vmul.f32 %v490, %v426
    %v555 = vmul.f32 %v491, %v427
    %v556 = vmul.f32 %v492, %v428
    %v557 = vmul.f32 %v493, %v429
    %v558 = vmul.f32 %v494, %v430
    %v559 = vmul.f32 %v495, %v431
    %v560 = vmul.f32 %v496, %v432
    %v561 = vmul.f32 %v497, %v433
    %v562 = vmul.f32 %v498, %v434
    %v563 = vmul.f32 %v499, %v435
    %v564 = vmul.f32 %v500, %v436
    %v565 = vmul.f32 %v501, %v437
    %v566 = vmul.f32 %v502, %v438
    %v567 = vmul.f32 %v503, %v439
    %v568 = vmul.f32 %v504, %v440
    %v569 = vmul.f32 %v505, %v441
    %v570 = vmul.f32 %v506, %v442
    %v571 = vmul.f32 %v507, %v443
    %v572 = vmul.f32 %v508, %v444
    %v573 = vmul.f32 %v509, %v445
    %v574 = vmul.f32 %v510, %v446
    %v575 = vmul.f32 %v511, %v447
    %v576 = vmul.f32 %v512, %v448
    %v577 = vmul.f32 %v513, %v449
    %v578 = vmul.f32 %v514, %v450
    %v579 = vmul.f32 %v515, %v451
    %v580 = vmul.f32 %v516, %v452
    %v581 = vmul.f32 %v517, %v453
    %v582 = vmul.f32 %v518, %v454
    %v583 = vmul.f32 %v519, %v455
    %v584 = vmul.f32 %v520, %v456
    %v585 = vmul.f32 %v521, %v457
    %v586 = vmul.f32 %v522, %v458
    %v587 = vmul.f32 %v523, %v459
    %v588 = vmul.f32 %v524, %v460
    %v589 = vmul.f32 %v525, %v461
    %v590 = vmul.f32 %v526, %v462
    %v591 = vmul.f32 %v527, %v463
    %v592 = vmul.f32 %v528, %v464
    %v593 = vmul.f32 %v529, %v465
    %v594 = vmul.f32 %v530, %v466
    %v595 = vmul.f32 %v531, 1.442695
    %v596 = vpow.pop %v595
    %v597 = vmul.f32 %v532, 1.442695
    %v598 = vpow.pop %v597
    %v599 = vmul.f32 %v533, 1.442695
    %v600 = vpow.pop %v599
    %v601 = vmul.f32 %v534, 1.442695
    %v602 = vpow.pop %v601
    %v603 = vmul.f32 %v535, 1.442695
    %v604 = vpow.pop %v603
    %v605 = vmul.f32 %v536, 1.442695
    %v606 = vpow.pop %v605
    %v607 = vmul.f32 %v537, 1.442695
    %v608 = vpow.pop %v607
    %v609 = vmul.f32 %v538, 1.442695
    %v610 = vpow.pop %v609
    %v611 = vmul.f32 %v539, 1.442695
    %v612 = vpow.pop %v611
    %v613 = vmul.f32 %v540, 1.442695
    %v614 = vpow.pop %v613
    %v615 = vmul.f32 %v541, 1.442695
    %v616 = vpow.pop %v615
    %v617 = vmul.f32 %v542, 1.442695
    %v618 = vpow.pop %v617
    %v619 = vmul.f32 %v543, 1.442695
    %v620 = vpow.pop %v619
    %v621 = vmul.f32 %v544, 1.442695
    %v622 = vpow.pop %v621
    %v623 = vmul.f32 %v545, 1.442695
    %v624 = vpow.pop %v623
    %v625 = vmul.f32 %v546, 1.442695
    %v626 = vpow.pop %v625
    %v627 = vmul.f32 %v547, 1.442695
    %v628 = vpow.pop %v627
    %v629 = vmul.f32 %v548, 1.442695
    %v630 = vpow.pop %v629
    %v631 = vmul.f32 %v549, 1.442695
    %v632 = vpow.pop %v631
    %v633 = vmul.f32 %v550, 1.442695
    %v634 = vpow.pop %v633
    %v635 = vmul.f32 %v551, 1.442695
    %v636 = vpow.pop %v635
    %v637 = vmul.f32 %v552, 1.442695
    %v638 = vpow.pop %v637
    %v639 = vmul.f32 %v553, 1.442695
    %v640 = vpow.pop %v639
    %v641 = vmul.f32 %v554, 1.442695
    %v642 = vpow.pop %v641
    %v643 = vmul.f32 %v555, 1.442695
    %v644 = vpow.pop %v643
    %v645 = vmul.f32 %v556, 1.442695
    %v646 = vpow.pop %v645
    %v647 = vmul.f32 %v557, 1.442695
    %v648 = vpow.pop %v647
    %v649 = vmul.f32 %v558, 1.442695
    %v650 = vpow.pop %v649
    %v651 = vmul.f32 %v559, 1.442695
    %v652 = vpow.pop %v651
    %v653 = vmul.f32 %v560, 1.442695
    %v654 = vpow.pop %v653
    %v655 = vmul.f32 %v561, 1.442695
    %v656 = vpow.pop %v655
    %v657 = vmul.f32 %v562, 1.442695
    %v658 = vpow.pop %v657
    %v659 = vmul.f32 %v563, 1.442695
    %v660 = vpow.pop %v659
    %v661 = vmul.f32 %v564, 1.442695
    %v662 = vpow.pop %v661
    %v663 = vmul.f32 %v565, 1.442695
    %v664 = vpow.pop %v663
    %v665 = vmul.f32 %v566, 1.442695
    %v666 = vpow.pop %v665
    %v667 = vmul.f32 %v567, 1.442695
    %v668 = vpow.pop %v667
    %v669 = vmul.f32 %v568, 1.442695
    %v670 = vpow.pop %v669
    %v671 = vmul.f32 %v569, 1.442695
    %v672 = vpow.pop %v671
    %v673 = vmul.f32 %v570, 1.442695
    %v674 = vpow.pop %v673
    %v675 = vmul.f32 %v571, 1.442695
    %v676 = vpow.pop %v675
    %v677 = vmul.f32 %v572, 1.442695
    %v678 = vpow.pop %v677
    %v679 = vmul.f32 %v573, 1.442695
    %v680 = vpow.pop %v679
    %v681 = vmul.f32 %v574, 1.442695
    %v682 = vpow.pop %v681
    %v683 = vmul.f32 %v575, 1.442695
    %v684 = vpow.pop %v683
    %v685 = vmul.f32 %v576, 1.442695
    %v686 = vpow.pop %v685
    %v687 = vmul.f32 %v577, 1.442695
    %v688 = vpow.pop %v687
    %v689 = vmul.f32 %v578, 1.442695
    %v690 = vpow.pop %v689
    %v691 = vmul.f32 %v579, 1.442695
    %v692 = vpow.pop %v691
    %v693 = vmul.f32 %v580, 1.442695
    %v694 = vpow.pop %v693
    %v695 = vmul.f32 %v581, 1.442695
    %v696 = vpow.pop %v695
    %v697 = vmul.f32 %v582, 1.442695
    %v698 = vpow.pop %v697
    %v699 = vmul.f32 %v583, 1.442695
    %v700 = vpow.pop %v699
    %v701 = vmul.f32 %v584, 1.442695
    %v702 = vpow.pop %v701
    %v703 = vmul.f32 %v585, 1.442695
    %v704 = vpow.pop %v703
    %v705 = vmul.f32 %v586, 1.442695
    %v706 = vpow.pop %v705
    %v707 = vmul.f32 %v587, 1.442695
    %v708 = vpow.pop %v707
    %v709 = vmul.f32 %v588, 1.442695
    %v710 = vpow.pop %v709
    %v711 = vmul.f32 %v589, 1.442695
    %v712 = vpow.pop %v711
    %v713 = vmul.f32 %v590, 1.442695
    %v714 = vpow.pop %v713
    %v715 = vmul.f32 %v591, 1.442695
    %v716 = vpow.pop %v715
    %v717 = vmul.f32 %v592, 1.442695
    %v718 = vpow.pop %v717
    %v719 = vmul.f32 %v593, 1.442695
    %v720 = vpow.pop %v719
    %v721 = vmul.f32 %v594, 1.442695
    %v722 = vpow.pop %v721
    %v723 = vlaneseq
    %v724 = vand.u32 %v723, 127
    %725 = vset.pattern.permute.xlu0 1
    %726 = vperm.xlu0 %725, %v15
    %v727 = vpop.permute.xlu0 %726
    %728 = vset.pattern.permute.xlu0 1
    %729 = vperm.xlu0 %728, %v16
    %v730 = vpop.permute.xlu0 %729
    %731 = vset.pattern.permute.xlu0 1
    %732 = vperm.xlu0 %731, %v17
    %v733 = vpop.permute.xlu0 %732
    %734 = vset.pattern.permute.xlu0 1
    %735 = vperm.xlu0 %734, %v18
    %v736 = vpop.permute.xlu0 %735
    %737 = vset.pattern.permute.xlu0 1
    %738 = vperm.xlu0 %737, %v19
    %v739 = vpop.permute.xlu0 %738
    %740 = vset.pattern.permute.xlu0 1
    %741 = vperm.xlu0 %740, %v20
    %v742 = vpop.permute.xlu0 %741
    %743 = vset.pattern.permute.xlu0 1
    %744 = vperm.xlu0 %743, %v21
    %v745 = vpop.permute.xlu0 %744
    %746 = vset.pattern.permute.xlu0 1
    %747 = vperm.xlu0 %746, %v22
    %v748 = vpop.permute.xlu0 %747
    %749 = vset.pattern.permute.xlu0 1
    %750 = vperm.xlu0 %749, %v23
    %v751 = vpop.permute.xlu0 %750
    %752 = vset.pattern.permute.xlu0 1
    %753 = vperm.xlu0 %752, %v24
    %v754 = vpop.permute.xlu0 %753
    %755 = vset.pattern.permute.xlu0 1
    %756 = vperm.xlu0 %755, %v25
    %v757 = vpop.permute.xlu0 %756
    %758 = vset.pattern.permute.xlu0 1
    %759 = vperm.xlu0 %758, %v26
    %v760 = vpop.permute.xlu0 %759
    %761 = vset.pattern.permute.xlu0 1
    %762 = vperm.xlu0 %761, %v27
    %v763 = vpop.permute.xlu0 %762
    %764 = vset.pattern.permute.xlu0 1
    %765 = vperm.xlu0 %764, %v28
    %v766 = vpop.permute.xlu0 %765
    %767 = vset.pattern.permute.xlu0 1
    %768 = vperm.xlu0 %767, %v29
    %v769 = vpop.permute.xlu0 %768
    %770 = vset.pattern.permute.xlu0 1
    %771 = vperm.xlu0 %770, %v30
    %v772 = vpop.permute.xlu0 %771
    %773 = vset.pattern.permute.xlu0 1
    %774 = vperm.xlu0 %773, %v31
    %v775 = vpop.permute.xlu0 %774
    %776 = vset.pattern.permute.xlu0 1
    %777 = vperm.xlu0 %776, %v32
    %v778 = vpop.permute.xlu0 %777
    %779 = vset.pattern.permute.xlu0 1
    %780 = vperm.xlu0 %779, %v33
    %v781 = vpop.permute.xlu0 %780
    %782 = vset.pattern.permute.xlu0 1
    %783 = vperm.xlu0 %782, %v34
    %v784 = vpop.permute.xlu0 %783
    %785 = vset.pattern.permute.xlu0 1
    %786 = vperm.xlu0 %785, %v35
    %v787 = vpop.permute.xlu0 %786
    %788 = vset.pattern.permute.xlu0 1
    %789 = vperm.xlu0 %788, %v36
    %v790 = vpop.permute.xlu0 %789
    %791 = vset.pattern.permute.xlu0 1
    %792 = vperm.xlu0 %791, %v37
    %v793 = vpop.permute.xlu0 %792
    %794 = vset.pattern.permute.xlu0 1
    %795 = vperm.xlu0 %794, %v38
    %v796 = vpop.permute.xlu0 %795
    %797 = vset.pattern.permute.xlu0 1
    %798 = vperm.xlu0 %797, %v39
    %v799 = vpop.permute.xlu0 %798
    %800 = vset.pattern.permute.xlu0 1
    %801 = vperm.xlu0 %800, %v40
    %v802 = vpop.permute.xlu0 %801
    %803 = vset.pattern.permute.xlu0 1
    %804 = vperm.xlu0 %803, %v41
    %v805 = vpop.permute.xlu0 %804
    %806 = vset.pattern.permute.xlu0 1
    %807 = vperm.xlu0 %806, %v42
    %v808 = vpop.permute.xlu0 %807
    %809 = vset.pattern.permute.xlu0 1
    %810 = vperm.xlu0 %809, %v43
    %v811 = vpop.permute.xlu0 %810
    %812 = vset.pattern.permute.xlu0 1
    %813 = vperm.xlu0 %812, %v44
    %v814 = vpop.permute.xlu0 %813
    %815 = vset.pattern.permute.xlu0 1
    %816 = vperm.xlu0 %815, %v45
    %v817 = vpop.permute.xlu0 %816
    %818 = vset.pattern.permute.xlu0 1
    %819 = vperm.xlu0 %818, %v46
    %v820 = vpop.permute.xlu0 %819
    %821 = vset.pattern.permute.xlu0 1
    %822 = vperm.xlu0 %821, %v47
    %v823 = vpop.permute.xlu0 %822
    %824 = vset.pattern.permute.xlu0 1
    %825 = vperm.xlu0 %824, %v48
    %v826 = vpop.permute.xlu0 %825
    %827 = vset.pattern.permute.xlu0 1
    %828 = vperm.xlu0 %827, %v49
    %v829 = vpop.permute.xlu0 %828
    %830 = vset.pattern.permute.xlu0 1
    %831 = vperm.xlu0 %830, %v50
    %v832 = vpop.permute.xlu0 %831
    %833 = vset.pattern.permute.xlu0 1
    %834 = vperm.xlu0 %833, %v51
    %v835 = vpop.permute.xlu0 %834
    %836 = vset.pattern.permute.xlu0 1
    %837 = vperm.xlu0 %836, %v52
    %v838 = vpop.permute.xlu0 %837
    %839 = vset.pattern.permute.xlu0 1
    %840 = vperm.xlu0 %839, %v53
    %v841 = vpop.permute.xlu0 %840
    %842 = vset.pattern.permute.xlu0 1
    %843 = vperm.xlu0 %842, %v54
    %v844 = vpop.permute.xlu0 %843
    %845 = vset.pattern.permute.xlu0 1
    %846 = vperm.xlu0 %845, %v55
    %v847 = vpop.permute.xlu0 %846
    %848 = vset.pattern.permute.xlu0 1
    %849 = vperm.xlu0 %848, %v56
    %v850 = vpop.permute.xlu0 %849
    %851 = vset.pattern.permute.xlu0 1
    %852 = vperm.xlu0 %851, %v57
    %v853 = vpop.permute.xlu0 %852
    %854 = vset.pattern.permute.xlu0 1
    %855 = vperm.xlu0 %854, %v58
    %v856 = vpop.permute.xlu0 %855
    %857 = vset.pattern.permute.xlu0 1
    %858 = vperm.xlu0 %857, %v59
    %v859 = vpop.permute.xlu0 %858
    %860 = vset.pattern.permute.xlu0 1
    %861 = vperm.xlu0 %860, %v60
    %v862 = vpop.permute.xlu0 %861
    %863 = vset.pattern.permute.xlu0 1
    %864 = vperm.xlu0 %863, %v61
    %v865 = vpop.permute.xlu0 %864
    %866 = vset.pattern.permute.xlu0 1
    %867 = vperm.xlu0 %866, %v62
    %v868 = vpop.permute.xlu0 %867
    %869 = vset.pattern.permute.xlu0 1
    %870 = vperm.xlu0 %869, %v63
    %v871 = vpop.permute.xlu0 %870
    %872 = vset.pattern.permute.xlu0 1
    %873 = vperm.xlu0 %872, %v64
    %v874 = vpop.permute.xlu0 %873
    %875 = vset.pattern.permute.xlu0 1
    %876 = vperm.xlu0 %875, %v65
    %v877 = vpop.permute.xlu0 %876
    %878 = vset.pattern.permute.xlu0 1
    %879 = vperm.xlu0 %878, %v66
    %v880 = vpop.permute.xlu0 %879
    %881 = vset.pattern.permute.xlu0 1
    %882 = vperm.xlu0 %881, %v67
    %v883 = vpop.permute.xlu0 %882
    %884 = vset.pattern.permute.xlu0 1
    %885 = vperm.xlu0 %884, %v68
    %v886 = vpop.permute.xlu0 %885
    %887 = vset.pattern.permute.xlu0 1
    %888 = vperm.xlu0 %887, %v69
    %v889 = vpop.permute.xlu0 %888
    %890 = vset.pattern.permute.xlu0 1
    %891 = vperm.xlu0 %890, %v70
    %v892 = vpop.permute.xlu0 %891
    %893 = vset.pattern.permute.xlu0 1
    %894 = vperm.xlu0 %893, %v71
    %v895 = vpop.permute.xlu0 %894
    %896 = vset.pattern.permute.xlu0 1
    %897 = vperm.xlu0 %896, %v72
    %v898 = vpop.permute.xlu0 %897
    %899 = vset.pattern.permute.xlu0 1
    %900 = vperm.xlu0 %899, %v73
    %v901 = vpop.permute.xlu0 %900
    %902 = vset.pattern.permute.xlu0 1
    %903 = vperm.xlu0 %902, %v74
    %v904 = vpop.permute.xlu0 %903
    %905 = vset.pattern.permute.xlu0 1
    %906 = vperm.xlu0 %905, %v75
    %v907 = vpop.permute.xlu0 %906
    %908 = vset.pattern.permute.xlu0 1
    %909 = vperm.xlu0 %908, %v76
    %v910 = vpop.permute.xlu0 %909
    %911 = vset.pattern.permute.xlu0 1
    %912 = vperm.xlu0 %911, %v77
    %v913 = vpop.permute.xlu0 %912
    %914 = vset.pattern.permute.xlu0 1
    %915 = vperm.xlu0 %914, %v78
    %v916 = vpop.permute.xlu0 %915
    %vm917 = vcmp.eq.s32.totalorder %v724, %v727
    %vm918 = vcmp.eq.s32.totalorder %v724, %v730
    %vm919 = vcmp.eq.s32.totalorder %v724, %v733
    %vm920 = vcmp.eq.s32.totalorder %v724, %v736
    %vm921 = vcmp.eq.s32.totalorder %v724, %v739
    %vm922 = vcmp.eq.s32.totalorder %v724, %v742
    %vm923 = vcmp.eq.s32.totalorder %v724, %v745
    %vm924 = vcmp.eq.s32.totalorder %v724, %v748
    %vm925 = vcmp.eq.s32.totalorder %v724, %v751
    %vm926 = vcmp.eq.s32.totalorder %v724, %v754
    %vm927 = vcmp.eq.s32.totalorder %v724, %v757
    %vm928 = vcmp.eq.s32.totalorder %v724, %v760
    %vm929 = vcmp.eq.s32.totalorder %v724, %v763
    %vm930 = vcmp.eq.s32.totalorder %v724, %v766
    %vm931 = vcmp.eq.s32.totalorder %v724, %v769
    %vm932 = vcmp.eq.s32.totalorder %v724, %v772
    %vm933 = vcmp.eq.s32.totalorder %v724, %v775
    %vm934 = vcmp.eq.s32.totalorder %v724, %v778
    %vm935 = vcmp.eq.s32.totalorder %v724, %v781
    %vm936 = vcmp.eq.s32.totalorder %v724, %v784
    %vm937 = vcmp.eq.s32.totalorder %v724, %v787
    %vm938 = vcmp.eq.s32.totalorder %v724, %v790
    %vm939 = vcmp.eq.s32.totalorder %v724, %v793
    %vm940 = vcmp.eq.s32.totalorder %v724, %v796
    %vm941 = vcmp.eq.s32.totalorder %v724, %v799
    %vm942 = vcmp.eq.s32.totalorder %v724, %v802
    %vm943 = vcmp.eq.s32.totalorder %v724, %v805
    %vm944 = vcmp.eq.s32.totalorder %v724, %v808
    %vm945 = vcmp.eq.s32.totalorder %v724, %v811
    %vm946 = vcmp.eq.s32.totalorder %v724, %v814
    %vm947 = vcmp.eq.s32.totalorder %v724, %v817
    %vm948 = vcmp.eq.s32.totalorder %v724, %v820
    %vm949 = vcmp.eq.s32.totalorder %v724, %v823
    %vm950 = vcmp.eq.s32.totalorder %v724, %v826
    %vm951 = vcmp.eq.s32.totalorder %v724, %v829
    %vm952 = vcmp.eq.s32.totalorder %v724, %v832
    %vm953 = vcmp.eq.s32.totalorder %v724, %v835
    %vm954 = vcmp.eq.s32.totalorder %v724, %v838
    %vm955 = vcmp.eq.s32.totalorder %v724, %v841
    %vm956 = vcmp.eq.s32.totalorder %v724, %v844
    %vm957 = vcmp.eq.s32.totalorder %v724, %v847
    %vm958 = vcmp.eq.s32.totalorder %v724, %v850
    %vm959 = vcmp.eq.s32.totalorder %v724, %v853
    %vm960 = vcmp.eq.s32.totalorder %v724, %v856
    %vm961 = vcmp.eq.s32.totalorder %v724, %v859
    %vm962 = vcmp.eq.s32.totalorder %v724, %v862
    %vm963 = vcmp.eq.s32.totalorder %v724, %v865
    %vm964 = vcmp.eq.s32.totalorder %v724, %v868
    %vm965 = vcmp.eq.s32.totalorder %v724, %v871
    %vm966 = vcmp.eq.s32.totalorder %v724, %v874
    %vm967 = vcmp.eq.s32.totalorder %v724, %v877
    %vm968 = vcmp.eq.s32.totalorder %v724, %v880
    %vm969 = vcmp.eq.s32.totalorder %v724, %v883
    %vm970 = vcmp.eq.s32.totalorder %v724, %v886
    %vm971 = vcmp.eq.s32.totalorder %v724, %v889
    %vm972 = vcmp.eq.s32.totalorder %v724, %v892
    %vm973 = vcmp.eq.s32.totalorder %v724, %v895
    %vm974 = vcmp.eq.s32.totalorder %v724, %v898
    %vm975 = vcmp.eq.s32.totalorder %v724, %v901
    %vm976 = vcmp.eq.s32.totalorder %v724, %v904
    %vm977 = vcmp.eq.s32.totalorder %v724, %v907
    %vm978 = vcmp.eq.s32.totalorder %v724, %v910
    %vm979 = vcmp.eq.s32.totalorder %v724, %v913
    %vm980 = vcmp.eq.s32.totalorder %v724, %v916
    %v981 = vsel %vm917, 1, 0
    %v982 = vsel %vm918, 1, 0
    %v983 = vsel %vm919, 1, 0
    %v984 = vsel %vm920, 1, 0
    %v985 = vsel %vm921, 1, 0
    %v986 = vsel %vm922, 1, 0
    %v987 = vsel %vm923, 1, 0
    %v988 = vsel %vm924, 1, 0
    %v989 = vsel %vm925, 1, 0
    %v990 = vsel %vm926, 1, 0
    %v991 = vsel %vm927, 1, 0
    %v992 = vsel %vm928, 1, 0
    %v993 = vsel %vm929, 1, 0
    %v994 = vsel %vm930, 1, 0
    %v995 = vsel %vm931, 1, 0
    %v996 = vsel %vm932, 1, 0
    %v997 = vsel %vm933, 1, 0
    %v998 = vsel %vm934, 1, 0
    %v999 = vsel %vm935, 1, 0
    %v1000 = vsel %vm936, 1, 0
    %v1001 = vsel %vm937, 1, 0
    %v1002 = vsel %vm938, 1, 0
    %v1003 = vsel %vm939, 1, 0
    %v1004 = vsel %vm940, 1, 0
    %v1005 = vsel %vm941, 1, 0
    %v1006 = vsel %vm942, 1, 0
    %v1007 = vsel %vm943, 1, 0
    %v1008 = vsel %vm944, 1, 0
    %v1009 = vsel %vm945, 1, 0
    %v1010 = vsel %vm946, 1, 0
    %v1011 = vsel %vm947, 1, 0
    %v1012 = vsel %vm948, 1, 0
    %v1013 = vsel %vm949, 1, 0
    %v1014 = vsel %vm950, 1, 0
    %v1015 = vsel %vm951, 1, 0
    %v1016 = vsel %vm952, 1, 0
    %v1017 = vsel %vm953, 1, 0
    %v1018 = vsel %vm954, 1, 0
    %v1019 = vsel %vm955, 1, 0
    %v1020 = vsel %vm956, 1, 0
    %v1021 = vsel %vm957, 1, 0
    %v1022 = vsel %vm958, 1, 0
    %v1023 = vsel %vm959, 1, 0
    %v1024 = vsel %vm960, 1, 0
    %v1025 = vsel %vm961, 1, 0
    %v1026 = vsel %vm962, 1, 0
    %v1027 = vsel %vm963, 1, 0
    %v1028 = vsel %vm964, 1, 0
    %v1029 = vsel %vm965, 1, 0
    %v1030 = vsel %vm966, 1, 0
    %v1031 = vsel %vm967, 1, 0
    %v1032 = vsel %vm968, 1, 0
    %v1033 = vsel %vm969, 1, 0
    %v1034 = vsel %vm970, 1, 0
    %v1035 = vsel %vm971, 1, 0
    %v1036 = vsel %vm972, 1, 0
    %v1037 = vsel %vm973, 1, 0
    %v1038 = vsel %vm974, 1, 0
    %v1039 = vsel %vm975, 1, 0
    %v1040 = vsel %vm976, 1, 0
    %v1041 = vsel %vm977, 1, 0
    %v1042 = vsel %vm978, 1, 0
    %v1043 = vsel %vm979, 1, 0
    %v1044 = vsel %vm980, 1, 0
    %v1045 = vcvt.s32.f32 %v981
    %v1046 = vcvt.s32.f32 %v982
    %v1047 = vcvt.s32.f32 %v983
    %v1048 = vcvt.s32.f32 %v984
    %v1049 = vcvt.s32.f32 %v985
    %v1050 = vcvt.s32.f32 %v986
    %v1051 = vcvt.s32.f32 %v987
    %v1052 = vcvt.s32.f32 %v988
    %v1053 = vcvt.s32.f32 %v989
    %v1054 = vcvt.s32.f32 %v990
    %v1055 = vcvt.s32.f32 %v991
    %v1056 = vcvt.s32.f32 %v992
    %v1057 = vcvt.s32.f32 %v993
    %v1058 = vcvt.s32.f32 %v994
    %v1059 = vcvt.s32.f32 %v995
    %v1060 = vcvt.s32.f32 %v996
    %v1061 = vcvt.s32.f32 %v997
    %v1062 = vcvt.s32.f32 %v998
    %v1063 = vcvt.s32.f32 %v999
    %v1064 = vcvt.s32.f32 %v1000
    %v1065 = vcvt.s32.f32 %v1001
    %v1066 = vcvt.s32.f32 %v1002
    %v1067 = vcvt.s32.f32 %v1003
    %v1068 = vcvt.s32.f32 %v1004
    %v1069 = vcvt.s32.f32 %v1005
    %v1070 = vcvt.s32.f32 %v1006
    %v1071 = vcvt.s32.f32 %v1007
    %v1072 = vcvt.s32.f32 %v1008
    %v1073 = vcvt.s32.f32 %v1009
    %v1074 = vcvt.s32.f32 %v1010
    %v1075 = vcvt.s32.f32 %v1011
    %v1076 = vcvt.s32.f32 %v1012
    %v1077 = vcvt.s32.f32 %v1013
    %v1078 = vcvt.s32.f32 %v1014
    %v1079 = vcvt.s32.f32 %v1015
    %v1080 = vcvt.s32.f32 %v1016
    %v1081 = vcvt.s32.f32 %v1017
    %v1082 = vcvt.s32.f32 %v1018
    %v1083 = vcvt.s32.f32 %v1019
    %v1084 = vcvt.s32.f32 %v1020
    %v1085 = vcvt.s32.f32 %v1021
    %v1086 = vcvt.s32.f32 %v1022
    %v1087 = vcvt.s32.f32 %v1023
    %v1088 = vcvt.s32.f32 %v1024
    %v1089 = vcvt.s32.f32 %v1025
    %v1090 = vcvt.s32.f32 %v1026
    %v1091 = vcvt.s32.f32 %v1027
    %v1092 = vcvt.s32.f32 %v1028
    %v1093 = vcvt.s32.f32 %v1029
    %v1094 = vcvt.s32.f32 %v1030
    %v1095 = vcvt.s32.f32 %v1031
    %v1096 = vcvt.s32.f32 %v1032
    %v1097 = vcvt.s32.f32 %v1033
    %v1098 = vcvt.s32.f32 %v1034
    %v1099 = vcvt.s32.f32 %v1035
    %v1100 = vcvt.s32.f32 %v1036
    %v1101 = vcvt.s32.f32 %v1037
    %v1102 = vcvt.s32.f32 %v1038
    %v1103 = vcvt.s32.f32 %v1039
    %v1104 = vcvt.s32.f32 %v1040
    %v1105 = vcvt.s32.f32 %v1041
    %v1106 = vcvt.s32.f32 %v1042
    %v1107 = vcvt.s32.f32 %v1043
    %v1108 = vcvt.s32.f32 %v1044
    %v1109 = vld [vmem:[%s2] sm:$0xff]
    %v1110 = vld [vmem:[%s2 + $0x8] sm:$0xff]
    %v1111 = vld [vmem:[%s2 + $0x10] sm:$0xff]
    %v1112 = vld [vmem:[%s2 + $0x18] sm:$0xff]
    %v1113 = vld [vmem:[%s2 + $0x20] sm:$0xff]
    %v1114 = vld [vmem:[%s2 + $0x28] sm:$0xff]
    %v1115 = vld [vmem:[%s2 + $0x30] sm:$0xff]
    %v1116 = vld [vmem:[%s2 + $0x38] sm:$0xff]
    %v1117 = vld [vmem:[%s2 + $0x40] sm:$0xff]
    %v1118 = vld [vmem:[%s2 + $0x48] sm:$0xff]
    %v1119 = vld [vmem:[%s2 + $0x50] sm:$0xff]
    %v1120 = vld [vmem:[%s2 + $0x58] sm:$0xff]
    %v1121 = vld [vmem:[%s2 + $0x60] sm:$0xff]
    %v1122 = vld [vmem:[%s2 + $0x68] sm:$0xff]
    %v1123 = vld [vmem:[%s2 + $0x70] sm:$0xff]
    %v1124 = vld [vmem:[%s2 + $0x78] sm:$0xff]
    %1125 = vmatpush.msra.mxu0 %v1124
    %1126 = vmatpush.msra.mxu0 %v1123
    %1127 = vmatpush.msra.mxu0 %v1122
    %1128 = vmatpush.msra.mxu0 %v1121
    %1129 = vmatpush.msra.mxu0 %v1120
    %1130 = vmatpush.msra.mxu0 %v1119
    %1131 = vmatpush.msra.mxu0 %v1118
    %1132 = vmatpush.msra.mxu0 %v1117
    %1133 = vmatpush.msra.mxu0 %v1116
    %1134 = vmatpush.msra.mxu0 %v1115
    %1135 = vmatpush.msra.mxu0 %v1114
    %1136 = vmatpush.msra.mxu0 %v1113
    %1137 = vmatpush.msra.mxu0 %v1112
    %1138 = vmatpush.msra.mxu0 %v1111
    %1139 = vmatpush.msra.mxu0 %v1110
    %1140 = vmatpush.msra.mxu0 %v1109
    %1141 = vmatmul.f32.gmra.mxu0 %v1045
    %v1142 = vpop.f32.mrf.mxu0
    %v1143 = vadd.f32 0.0, %v1142
    %1144 = vmatmul.f32.gmra.mxu0 %v1046
    %v1145 = vpop.f32.mrf.mxu0
    %v1146 = vadd.f32 0.0, %v1145
    %1147 = vmatmul.f32.gmra.mxu0 %v1047
    %v1148 = vpop.f32.mrf.mxu0
    %v1149 = vadd.f32 0.0, %v1148
    %1150 = vmatmul.f32.gmra.mxu0 %v1048
    %v1151 = vpop.f32.mrf.mxu0
    %v1152 = vadd.f32 0.0, %v1151
    %1153 = vmatmul.f32.gmra.mxu0 %v1049
    %v1154 = vpop.f32.mrf.mxu0
    %v1155 = vadd.f32 0.0, %v1154
    %1156 = vmatmul.f32.gmra.mxu0 %v1050
    %v1157 = vpop.f32.mrf.mxu0
    %v1158 = vadd.f32 0.0, %v1157
    %1159 = vmatmul.f32.gmra.mxu0 %v1051
    %v1160 = vpop.f32.mrf.mxu0
    %v1161 = vadd.f32 0.0, %v1160
    %1162 = vmatmul.f32.gmra.mxu0 %v1052
    %v1163 = vpop.f32.mrf.mxu0
    %v1164 = vadd.f32 0.0, %v1163
    %1165 = vmatmul.f32.gmra.mxu0 %v1053
    %v1166 = vpop.f32.mrf.mxu0
    %v1167 = vadd.f32 0.0, %v1166
    %1168 = vmatmul.f32.gmra.mxu0 %v1054
    %v1169 = vpop.f32.mrf.mxu0
    %v1170 = vadd.f32 0.0, %v1169
    %1171 = vmatmul.f32.gmra.mxu0 %v1055
    %v1172 = vpop.f32.mrf.mxu0
    %v1173 = vadd.f32 0.0, %v1172
    %1174 = vmatmul.f32.gmra.mxu0 %v1056
    %v1175 = vpop.f32.mrf.mxu0
    %v1176 = vadd.f32 0.0, %v1175
    %1177 = vmatmul.f32.gmra.mxu0 %v1057
    %v1178 = vpop.f32.mrf.mxu0
    %v1179 = vadd.f32 0.0, %v1178
    %1180 = vmatmul.f32.gmra.mxu0 %v1058
    %v1181 = vpop.f32.mrf.mxu0
    %v1182 = vadd.f32 0.0, %v1181
    %1183 = vmatmul.f32.gmra.mxu0 %v1059
    %v1184 = vpop.f32.mrf.mxu0
    %v1185 = vadd.f32 0.0, %v1184
    %1186 = vmatmul.f32.gmra.mxu0 %v1060
    %v1187 = vpop.f32.mrf.mxu0
    %v1188 = vadd.f32 0.0, %v1187
    %1189 = vmatmul.f32.gmra.mxu0 %v1061
    %v1190 = vpop.f32.mrf.mxu0
    %v1191 = vadd.f32 0.0, %v1190
    %1192 = vmatmul.f32.gmra.mxu0 %v1062
    %v1193 = vpop.f32.mrf.mxu0
    %v1194 = vadd.f32 0.0, %v1193
    %1195 = vmatmul.f32.gmra.mxu0 %v1063
    %v1196 = vpop.f32.mrf.mxu0
    %v1197 = vadd.f32 0.0, %v1196
    %1198 = vmatmul.f32.gmra.mxu0 %v1064
    %v1199 = vpop.f32.mrf.mxu0
    %v1200 = vadd.f32 0.0, %v1199
    %1201 = vmatmul.f32.gmra.mxu0 %v1065
    %v1202 = vpop.f32.mrf.mxu0
    %v1203 = vadd.f32 0.0, %v1202
    %1204 = vmatmul.f32.gmra.mxu0 %v1066
    %v1205 = vpop.f32.mrf.mxu0
    %v1206 = vadd.f32 0.0, %v1205
    %1207 = vmatmul.f32.gmra.mxu0 %v1067
    %v1208 = vpop.f32.mrf.mxu0
    %v1209 = vadd.f32 0.0, %v1208
    %1210 = vmatmul.f32.gmra.mxu0 %v1068
    %v1211 = vpop.f32.mrf.mxu0
    %v1212 = vadd.f32 0.0, %v1211
    %1213 = vmatmul.f32.gmra.mxu0 %v1069
    %v1214 = vpop.f32.mrf.mxu0
    %v1215 = vadd.f32 0.0, %v1214
    %1216 = vmatmul.f32.gmra.mxu0 %v1070
    %v1217 = vpop.f32.mrf.mxu0
    %v1218 = vadd.f32 0.0, %v1217
    %1219 = vmatmul.f32.gmra.mxu0 %v1071
    %v1220 = vpop.f32.mrf.mxu0
    %v1221 = vadd.f32 0.0, %v1220
    %1222 = vmatmul.f32.gmra.mxu0 %v1072
    %v1223 = vpop.f32.mrf.mxu0
    %v1224 = vadd.f32 0.0, %v1223
    %1225 = vmatmul.f32.gmra.mxu0 %v1073
    %v1226 = vpop.f32.mrf.mxu0
    %v1227 = vadd.f32 0.0, %v1226
    %1228 = vmatmul.f32.gmra.mxu0 %v1074
    %v1229 = vpop.f32.mrf.mxu0
    %v1230 = vadd.f32 0.0, %v1229
    %1231 = vmatmul.f32.gmra.mxu0 %v1075
    %v1232 = vpop.f32.mrf.mxu0
    %v1233 = vadd.f32 0.0, %v1232
    %1234 = vmatmul.f32.gmra.mxu0 %v1076
    %v1235 = vpop.f32.mrf.mxu0
    %v1236 = vadd.f32 0.0, %v1235
    %1237 = vmatmul.f32.gmra.mxu0 %v1077
    %v1238 = vpop.f32.mrf.mxu0
    %v1239 = vadd.f32 0.0, %v1238
    %1240 = vmatmul.f32.gmra.mxu0 %v1078
    %v1241 = vpop.f32.mrf.mxu0
    %v1242 = vadd.f32 0.0, %v1241
    %1243 = vmatmul.f32.gmra.mxu0 %v1079
    %v1244 = vpop.f32.mrf.mxu0
    %v1245 = vadd.f32 0.0, %v1244
    %1246 = vmatmul.f32.gmra.mxu0 %v1080
    %v1247 = vpop.f32.mrf.mxu0
    %v1248 = vadd.f32 0.0, %v1247
    %1249 = vmatmul.f32.gmra.mxu0 %v1081
    %v1250 = vpop.f32.mrf.mxu0
    %v1251 = vadd.f32 0.0, %v1250
    %1252 = vmatmul.f32.gmra.mxu0 %v1082
    %v1253 = vpop.f32.mrf.mxu0
    %v1254 = vadd.f32 0.0, %v1253
    %1255 = vmatmul.f32.gmra.mxu0 %v1083
    %v1256 = vpop.f32.mrf.mxu0
    %v1257 = vadd.f32 0.0, %v1256
    %1258 = vmatmul.f32.gmra.mxu0 %v1084
    %v1259 = vpop.f32.mrf.mxu0
    %v1260 = vadd.f32 0.0, %v1259
    %1261 = vmatmul.f32.gmra.mxu0 %v1085
    %v1262 = vpop.f32.mrf.mxu0
    %v1263 = vadd.f32 0.0, %v1262
    %1264 = vmatmul.f32.gmra.mxu0 %v1086
    %v1265 = vpop.f32.mrf.mxu0
    %v1266 = vadd.f32 0.0, %v1265
    %1267 = vmatmul.f32.gmra.mxu0 %v1087
    %v1268 = vpop.f32.mrf.mxu0
    %v1269 = vadd.f32 0.0, %v1268
    %1270 = vmatmul.f32.gmra.mxu0 %v1088
    %v1271 = vpop.f32.mrf.mxu0
    %v1272 = vadd.f32 0.0, %v1271
    %1273 = vmatmul.f32.gmra.mxu0 %v1089
    %v1274 = vpop.f32.mrf.mxu0
    %v1275 = vadd.f32 0.0, %v1274
    %1276 = vmatmul.f32.gmra.mxu0 %v1090
    %v1277 = vpop.f32.mrf.mxu0
    %v1278 = vadd.f32 0.0, %v1277
    %1279 = vmatmul.f32.gmra.mxu0 %v1091
    %v1280 = vpop.f32.mrf.mxu0
    %v1281 = vadd.f32 0.0, %v1280
    %1282 = vmatmul.f32.gmra.mxu0 %v1092
    %v1283 = vpop.f32.mrf.mxu0
    %v1284 = vadd.f32 0.0, %v1283
    %1285 = vmatmul.f32.gmra.mxu0 %v1093
    %v1286 = vpop.f32.mrf.mxu0
    %v1287 = vadd.f32 0.0, %v1286
    %1288 = vmatmul.f32.gmra.mxu0 %v1094
    %v1289 = vpop.f32.mrf.mxu0
    %v1290 = vadd.f32 0.0, %v1289
    %1291 = vmatmul.f32.gmra.mxu0 %v1095
    %v1292 = vpop.f32.mrf.mxu0
    %v1293 = vadd.f32 0.0, %v1292
    %1294 = vmatmul.f32.gmra.mxu0 %v1096
    %v1295 = vpop.f32.mrf.mxu0
    %v1296 = vadd.f32 0.0, %v1295
    %1297 = vmatmul.f32.gmra.mxu0 %v1097
    %v1298 = vpop.f32.mrf.mxu0
    %v1299 = vadd.f32 0.0, %v1298
    %1300 = vmatmul.f32.gmra.mxu0 %v1098
    %v1301 = vpop.f32.mrf.mxu0
    %v1302 = vadd.f32 0.0, %v1301
    %1303 = vmatmul.f32.gmra.mxu0 %v1099
    %v1304 = vpop.f32.mrf.mxu0
    %v1305 = vadd.f32 0.0, %v1304
    %1306 = vmatmul.f32.gmra.mxu0 %v1100
    %v1307 = vpop.f32.mrf.mxu0
    %v1308 = vadd.f32 0.0, %v1307
    %1309 = vmatmul.f32.gmra.mxu0 %v1101
    %v1310 = vpop.f32.mrf.mxu0
    %v1311 = vadd.f32 0.0, %v1310
    %1312 = vmatmul.f32.gmra.mxu0 %v1102
    %v1313 = vpop.f32.mrf.mxu0
    %v1314 = vadd.f32 0.0, %v1313
    %1315 = vmatmul.f32.gmra.mxu0 %v1103
    %v1316 = vpop.f32.mrf.mxu0
    %v1317 = vadd.f32 0.0, %v1316
    %1318 = vmatmul.f32.gmra.mxu0 %v1104
    %v1319 = vpop.f32.mrf.mxu0
    %v1320 = vadd.f32 0.0, %v1319
    %1321 = vmatmul.f32.gmra.mxu0 %v1105
    %v1322 = vpop.f32.mrf.mxu0
    %v1323 = vadd.f32 0.0, %v1322
    %1324 = vmatmul.f32.gmra.mxu0 %v1106
    %v1325 = vpop.f32.mrf.mxu0
    %v1326 = vadd.f32 0.0, %v1325
    %1327 = vmatmul.f32.gmra.mxu0 %v1107
    %v1328 = vpop.f32.mrf.mxu0
    %v1329 = vadd.f32 0.0, %v1328
    %1330 = vmatmul.f32.gmra.mxu0 %v1108
    %v1331 = vpop.f32.mrf.mxu0
    %v1332 = vadd.f32 0.0, %v1331
    %1333 = vdwg.mxu0
    %1398 = vrot.lane.b32.xlu0 %v1143, 64
    %v1399 = vpop.permute.xlu0 %1398
    %1400 = vrot.lane.b32.xlu0 %v1146, 64
    %v1401 = vpop.permute.xlu0 %1400
    %1402 = vrot.lane.b32.xlu0 %v1149, 64
    %v1403 = vpop.permute.xlu0 %1402
    %1404 = vrot.lane.b32.xlu0 %v1152, 64
    %v1405 = vpop.permute.xlu0 %1404
    %1406 = vrot.lane.b32.xlu0 %v1155, 64
    %v1407 = vpop.permute.xlu0 %1406
    %1408 = vrot.lane.b32.xlu0 %v1158, 64
    %v1409 = vpop.permute.xlu0 %1408
    %1410 = vrot.lane.b32.xlu0 %v1161, 64
    %v1411 = vpop.permute.xlu0 %1410
    %1412 = vrot.lane.b32.xlu0 %v1164, 64
    %v1413 = vpop.permute.xlu0 %1412
    %1414 = vrot.lane.b32.xlu0 %v1167, 64
    %v1415 = vpop.permute.xlu0 %1414
    %1416 = vrot.lane.b32.xlu0 %v1170, 64
    %v1417 = vpop.permute.xlu0 %1416
    %1418 = vrot.lane.b32.xlu0 %v1173, 64
    %v1419 = vpop.permute.xlu0 %1418
    %1420 = vrot.lane.b32.xlu0 %v1176, 64
    %v1421 = vpop.permute.xlu0 %1420
    %1422 = vrot.lane.b32.xlu0 %v1179, 64
    %v1423 = vpop.permute.xlu0 %1422
    %1424 = vrot.lane.b32.xlu0 %v1182, 64
    %v1425 = vpop.permute.xlu0 %1424
    %1426 = vrot.lane.b32.xlu0 %v1185, 64
    %v1427 = vpop.permute.xlu0 %1426
    %1428 = vrot.lane.b32.xlu0 %v1188, 64
    %v1429 = vpop.permute.xlu0 %1428
    %1430 = vrot.lane.b32.xlu0 %v1191, 64
    %v1431 = vpop.permute.xlu0 %1430
    %1432 = vrot.lane.b32.xlu0 %v1194, 64
    %v1433 = vpop.permute.xlu0 %1432
    %1434 = vrot.lane.b32.xlu0 %v1197, 64
    %v1435 = vpop.permute.xlu0 %1434
    %1436 = vrot.lane.b32.xlu0 %v1200, 64
    %v1437 = vpop.permute.xlu0 %1436
    %1438 = vrot.lane.b32.xlu0 %v1203, 64
    %v1439 = vpop.permute.xlu0 %1438
    %1440 = vrot.lane.b32.xlu0 %v1206, 64
    %v1441 = vpop.permute.xlu0 %1440
    %1442 = vrot.lane.b32.xlu0 %v1209, 64
    %v1443 = vpop.permute.xlu0 %1442
    %1444 = vrot.lane.b32.xlu0 %v1212, 64
    %v1445 = vpop.permute.xlu0 %1444
    %1446 = vrot.lane.b32.xlu0 %v1215, 64
    %v1447 = vpop.permute.xlu0 %1446
    %1448 = vrot.lane.b32.xlu0 %v1218, 64
    %v1449 = vpop.permute.xlu0 %1448
    %1450 = vrot.lane.b32.xlu0 %v1221, 64
    %v1451 = vpop.permute.xlu0 %1450
    %1452 = vrot.lane.b32.xlu0 %v1224, 64
    %v1453 = vpop.permute.xlu0 %1452
    %1454 = vrot.lane.b32.xlu0 %v1227, 64
    %v1455 = vpop.permute.xlu0 %1454
    %1456 = vrot.lane.b32.xlu0 %v1230, 64
    %v1457 = vpop.permute.xlu0 %1456
    %1458 = vrot.lane.b32.xlu0 %v1233, 64
    %v1459 = vpop.permute.xlu0 %1458
    %1460 = vrot.lane.b32.xlu0 %v1236, 64
    %v1461 = vpop.permute.xlu0 %1460
    %1462 = vrot.lane.b32.xlu0 %v1239, 64
    %v1463 = vpop.permute.xlu0 %1462
    %1464 = vrot.lane.b32.xlu0 %v1242, 64
    %v1465 = vpop.permute.xlu0 %1464
    %1466 = vrot.lane.b32.xlu0 %v1245, 64
    %v1467 = vpop.permute.xlu0 %1466
    %1468 = vrot.lane.b32.xlu0 %v1248, 64
    %v1469 = vpop.permute.xlu0 %1468
    %1470 = vrot.lane.b32.xlu0 %v1251, 64
    %v1471 = vpop.permute.xlu0 %1470
    %1472 = vrot.lane.b32.xlu0 %v1254, 64
    %v1473 = vpop.permute.xlu0 %1472
    %1474 = vrot.lane.b32.xlu0 %v1257, 64
    %v1475 = vpop.permute.xlu0 %1474
    %1476 = vrot.lane.b32.xlu0 %v1260, 64
    %v1477 = vpop.permute.xlu0 %1476
    %1478 = vrot.lane.b32.xlu0 %v1263, 64
    %v1479 = vpop.permute.xlu0 %1478
    %1480 = vrot.lane.b32.xlu0 %v1266, 64
    %v1481 = vpop.permute.xlu0 %1480
    %1482 = vrot.lane.b32.xlu0 %v1269, 64
    %v1483 = vpop.permute.xlu0 %1482
    %1484 = vrot.lane.b32.xlu0 %v1272, 64
    %v1485 = vpop.permute.xlu0 %1484
    %1486 = vrot.lane.b32.xlu0 %v1275, 64
    %v1487 = vpop.permute.xlu0 %1486
    %1488 = vrot.lane.b32.xlu0 %v1278, 64
    %v1489 = vpop.permute.xlu0 %1488
    %1490 = vrot.lane.b32.xlu0 %v1281, 64
    %v1491 = vpop.permute.xlu0 %1490
    %1492 = vrot.lane.b32.xlu0 %v1284, 64
    %v1493 = vpop.permute.xlu0 %1492
    %1494 = vrot.lane.b32.xlu0 %v1287, 64
    %v1495 = vpop.permute.xlu0 %1494
    %1496 = vrot.lane.b32.xlu0 %v1290, 64
    %v1497 = vpop.permute.xlu0 %1496
    %1498 = vrot.lane.b32.xlu0 %v1293, 64
    %v1499 = vpop.permute.xlu0 %1498
    %1500 = vrot.lane.b32.xlu0 %v1296, 64
    %v1501 = vpop.permute.xlu0 %1500
    %1502 = vrot.lane.b32.xlu0 %v1299, 64
    %v1503 = vpop.permute.xlu0 %1502
    %1504 = vrot.lane.b32.xlu0 %v1302, 64
    %v1505 = vpop.permute.xlu0 %1504
    %1506 = vrot.lane.b32.xlu0 %v1305, 64
    %v1507 = vpop.permute.xlu0 %1506
    %1508 = vrot.lane.b32.xlu0 %v1308, 64
    %v1509 = vpop.permute.xlu0 %1508
    %1510 = vrot.lane.b32.xlu0 %v1311, 64
    %v1511 = vpop.permute.xlu0 %1510
    %1512 = vrot.lane.b32.xlu0 %v1314, 64
    %v1513 = vpop.permute.xlu0 %1512
    %1514 = vrot.lane.b32.xlu0 %v1317, 64
    %v1515 = vpop.permute.xlu0 %1514
    %1516 = vrot.lane.b32.xlu0 %v1320, 64
    %v1517 = vpop.permute.xlu0 %1516
    %1518 = vrot.lane.b32.xlu0 %v1323, 64
    %v1519 = vpop.permute.xlu0 %1518
    %1520 = vrot.lane.b32.xlu0 %v1326, 64
    %v1521 = vpop.permute.xlu0 %1520
    %1522 = vrot.lane.b32.xlu0 %v1329, 64
    %v1523 = vpop.permute.xlu0 %1522
    %1524 = vrot.lane.b32.xlu0 %v1332, 64
    %v1525 = vpop.permute.xlu0 %1524
    %vm1590 = vcmask 523264
    %v1591 = vsel %vm1590, %v596, %v1399
    %v1592 = vsel %vm1590, %v598, %v1401
    %v1593 = vsel %vm1590, %v600, %v1403
    %v1594 = vsel %vm1590, %v602, %v1405
    %v1595 = vsel %vm1590, %v604, %v1407
    %v1596 = vsel %vm1590, %v606, %v1409
    %v1597 = vsel %vm1590, %v608, %v1411
    %v1598 = vsel %vm1590, %v610, %v1413
    %v1599 = vsel %vm1590, %v612, %v1415
    %v1600 = vsel %vm1590, %v614, %v1417
    %v1601 = vsel %vm1590, %v616, %v1419
    %v1602 = vsel %vm1590, %v618, %v1421
    %v1603 = vsel %vm1590, %v620, %v1423
    %v1604 = vsel %vm1590, %v622, %v1425
    %v1605 = vsel %vm1590, %v624, %v1427
    %v1606 = vsel %vm1590, %v626, %v1429
    %v1607 = vsel %vm1590, %v628, %v1431
    %v1608 = vsel %vm1590, %v630, %v1433
    %v1609 = vsel %vm1590, %v632, %v1435
    %v1610 = vsel %vm1590, %v634, %v1437
    %v1611 = vsel %vm1590, %v636, %v1439
    %v1612 = vsel %vm1590, %v638, %v1441
    %v1613 = vsel %vm1590, %v640, %v1443
    %v1614 = vsel %vm1590, %v642, %v1445
    %v1615 = vsel %vm1590, %v644, %v1447
    %v1616 = vsel %vm1590, %v646, %v1449
    %v1617 = vsel %vm1590, %v648, %v1451
    %v1618 = vsel %vm1590, %v650, %v1453
    %v1619 = vsel %vm1590, %v652, %v1455
    %v1620 = vsel %vm1590, %v654, %v1457
    %v1621 = vsel %vm1590, %v656, %v1459
    %v1622 = vsel %vm1590, %v658, %v1461
    %v1623 = vsel %vm1590, %v660, %v1463
    %v1624 = vsel %vm1590, %v662, %v1465
    %v1625 = vsel %vm1590, %v664, %v1467
    %v1626 = vsel %vm1590, %v666, %v1469
    %v1627 = vsel %vm1590, %v668, %v1471
    %v1628 = vsel %vm1590, %v670, %v1473
    %v1629 = vsel %vm1590, %v672, %v1475
    %v1630 = vsel %vm1590, %v674, %v1477
    %v1631 = vsel %vm1590, %v676, %v1479
    %v1632 = vsel %vm1590, %v678, %v1481
    %v1633 = vsel %vm1590, %v680, %v1483
    %v1634 = vsel %vm1590, %v682, %v1485
    %v1635 = vsel %vm1590, %v684, %v1487
    %v1636 = vsel %vm1590, %v686, %v1489
    %v1637 = vsel %vm1590, %v688, %v1491
    %v1638 = vsel %vm1590, %v690, %v1493
    %v1639 = vsel %vm1590, %v692, %v1495
    %v1640 = vsel %vm1590, %v694, %v1497
    %v1641 = vsel %vm1590, %v696, %v1499
    %v1642 = vsel %vm1590, %v698, %v1501
    %v1643 = vsel %vm1590, %v700, %v1503
    %v1644 = vsel %vm1590, %v702, %v1505
    %v1645 = vsel %vm1590, %v704, %v1507
    %v1646 = vsel %vm1590, %v706, %v1509
    %v1647 = vsel %vm1590, %v708, %v1511
    %v1648 = vsel %vm1590, %v710, %v1513
    %v1649 = vsel %vm1590, %v712, %v1515
    %v1650 = vsel %vm1590, %v714, %v1517
    %v1651 = vsel %vm1590, %v716, %v1519
    %v1652 = vsel %vm1590, %v718, %v1521
    %v1653 = vsel %vm1590, %v720, %v1523
    %v1654 = vsel %vm1590, %v722, %v1525
    %1655 = vst [vmem:[#allocation2] sm:$0xff] %v1591
    %1656 = vst [vmem:[#allocation2 + $0x8] sm:$0xff] %v1592
    %1657 = vst [vmem:[#allocation2 + $0x10] sm:$0xff] %v1593
    %1658 = vst [vmem:[#allocation2 + $0x18] sm:$0xff] %v1594
    %1659 = vst [vmem:[#allocation2 + $0x20] sm:$0xff] %v1595
    %1660 = vst [vmem:[#allocation2 + $0x28] sm:$0xff] %v1596
    %1661 = vst [vmem:[#allocation2 + $0x30] sm:$0xff] %v1597
    %1662 = vst [vmem:[#allocation2 + $0x38] sm:$0xff] %v1598
    %1663 = vst [vmem:[#allocation2 + $0x40] sm:$0xff] %v1599
    %1664 = vst [vmem:[#allocation2 + $0x48] sm:$0xff] %v1600
    %1665 = vst [vmem:[#allocation2 + $0x50] sm:$0xff] %v1601
    %1666 = vst [vmem:[#allocation2 + $0x58] sm:$0xff] %v1602
    %1667 = vst [vmem:[#allocation2 + $0x60] sm:$0xff] %v1603
    %1668 = vst [vmem:[#allocation2 + $0x68] sm:$0xff] %v1604
    %1669 = vst [vmem:[#allocation2 + $0x70] sm:$0xff] %v1605
    %1670 = vst [vmem:[#allocation2 + $0x78] sm:$0xff] %v1606
    %1671 = vst [vmem:[#allocation2 + $0x80] sm:$0xff] %v1607
    %1672 = vst [vmem:[#allocation2 + $0x88] sm:$0xff] %v1608
    %1673 = vst [vmem:[#allocation2 + $0x90] sm:$0xff] %v1609
    %1674 = vst [vmem:[#allocation2 + $0x98] sm:$0xff] %v1610
    %1675 = vst [vmem:[#allocation2 + $0xa0] sm:$0xff] %v1611
    %1676 = vst [vmem:[#allocation2 + $0xa8] sm:$0xff] %v1612
    %1677 = vst [vmem:[#allocation2 + $0xb0] sm:$0xff] %v1613
    %1678 = vst [vmem:[#allocation2 + $0xb8] sm:$0xff] %v1614
    %1679 = vst [vmem:[#allocation2 + $0xc0] sm:$0xff] %v1615
    %1680 = vst [vmem:[#allocation2 + $0xc8] sm:$0xff] %v1616
    %1681 = vst [vmem:[#allocation2 + $0xd0] sm:$0xff] %v1617
    %1682 = vst [vmem:[#allocation2 + $0xd8] sm:$0xff] %v1618
    %1683 = vst [vmem:[#allocation2 + $0xe0] sm:$0xff] %v1619
    %1684 = vst [vmem:[#allocation2 + $0xe8] sm:$0xff] %v1620
    %1685 = vst [vmem:[#allocation2 + $0xf0] sm:$0xff] %v1621
    %1686 = vst [vmem:[#allocation2 + $0xf8] sm:$0xff] %v1622
    %1687 = vst [vmem:[#allocation2 + $0x100] sm:$0xff] %v1623
    %1688 = vst [vmem:[#allocation2 + $0x108] sm:$0xff] %v1624
    %1689 = vst [vmem:[#allocation2 + $0x110] sm:$0xff] %v1625
    %1690 = vst [vmem:[#allocation2 + $0x118] sm:$0xff] %v1626
    %1691 = vst [vmem:[#allocation2 + $0x120] sm:$0xff] %v1627
    %1692 = vst [vmem:[#allocation2 + $0x128] sm:$0xff] %v1628
    %1693 = vst [vmem:[#allocation2 + $0x130] sm:$0xff] %v1629
    %1694 = vst [vmem:[#allocation2 + $0x138] sm:$0xff] %v1630
    %1695 = vst [vmem:[#allocation2 + $0x140] sm:$0xff] %v1631
    %1696 = vst [vmem:[#allocation2 + $0x148] sm:$0xff] %v1632
    %1697 = vst [vmem:[#allocation2 + $0x150] sm:$0xff] %v1633
    %1698 = vst [vmem:[#allocation2 + $0x158] sm:$0xff] %v1634
    %1699 = vst [vmem:[#allocation2 + $0x160] sm:$0xff] %v1635
    %1700 = vst [vmem:[#allocation2 + $0x168] sm:$0xff] %v1636
    %1701 = vst [vmem:[#allocation2 + $0x170] sm:$0xff] %v1637
    %1702 = vst [vmem:[#allocation2 + $0x178] sm:$0xff] %v1638
    %1703 = vst [vmem:[#allocation2 + $0x180] sm:$0xff] %v1639
    %1704 = vst [vmem:[#allocation2 + $0x188] sm:$0xff] %v1640
    %1705 = vst [vmem:[#allocation2 + $0x190] sm:$0xff] %v1641
    %1706 = vst [vmem:[#allocation2 + $0x198] sm:$0xff] %v1642
    %1707 = vst [vmem:[#allocation2 + $0x1a0] sm:$0xff] %v1643
    %1708 = vst [vmem:[#allocation2 + $0x1a8] sm:$0xff] %v1644
    %1709 = vst [vmem:[#allocation2 + $0x1b0] sm:$0xff] %v1645
    %1710 = vst [vmem:[#allocation2 + $0x1b8] sm:$0xff] %v1646
    %1711 = vst [vmem:[#allocation2 + $0x1c0] sm:$0xff] %v1647
    %1712 = vst [vmem:[#allocation2 + $0x1c8] sm:$0xff] %v1648
    %1713 = vst [vmem:[#allocation2 + $0x1d0] sm:$0xff] %v1649
    %1714 = vst [vmem:[#allocation2 + $0x1d8] sm:$0xff] %v1650
    %1715 = vst [vmem:[#allocation2 + $0x1e0] sm:$0xff] %v1651
    %1716 = vst [vmem:[#allocation2 + $0x1e8] sm:$0xff] %v1652
    %1717 = vst [vmem:[#allocation2 + $0x1f0] sm:$0xff] %v1653
    %1718 = vst [vmem:[#allocation2 + $0x1f8] sm:$0xff] %v1654
    // Predicated region
    $region14: #{encode.1} parent=1 // pred_check
      _
    $region15: #{encode.1} parent=1 // pred_check_branch
      %1720 = sbr.rel (0) target = $region17
    $region16: #{encode.1} parent=1 // pred_region
      %1722 = vsyncadd [#allocation3], 3328
      %s1723 = sshll.u32 [#allocation2], 4
      %s1724 = int_to_ptr.vmem [resolvable:$true] %s1723
      %s1725 = sshll.u32 %s3, 4
      %s1726 = int_to_ptr.hbm [resolvable:$true] %s1725
      %1731 = dma.vmem_to_hbm [thread:$0]  %s1724, 4864, %s1726, [#allocation3], 128, 128, 8
    $region17: #{encode.1} parent=1 // pred_fallthru
      _
    // Predicated region
    $region18: #{encode.1} parent=1 // pred_check
      _
    $region19: #{encode.1} parent=1 // pred_check_branch
      %1733 = sbr.rel (0) target = $region21
    $region20: #{encode.1} parent=1 // pred_region
      %1735 = dma.done [#allocation3], 8192
    $region21: #{encode.1} parent=1 // pred_fallthru
      _
    %1736 = vsyncpa [#allocation3], 1

</llo_original>
